<compile_context>
chip_gen: v6e
topology: v6e:2x2x1
jax: 0.10.0
libtpu: 0.0.40
codegen_flags: <defaults>
</compile_context>

<pallas_src>
import jax
import jax.numpy as jnp
import numpy as np
from jax import lax
from jax.experimental import pallas as pl
from jax.experimental.pallas import tpu as pltpu

# ---------------- model hyper-parameters (small, consistent with the module) ----------
B = 2           # batch
N = 8           # sequence length
DIM = 32        # embedding dim
HEADS = 4       # number of heads
DIM_HEAD = 8    # per-head dim
INNER = HEADS * DIM_HEAD           # 32
SCALE = DIM ** (-0.5)              # module scales by dim**-0.5 (not dim_head**-0.5) -- intentional
LN_EPS = 1e-5                      # nn.LayerNorm default

ROWS = B * N                       # 16 token rows
G = HEADS * B * N                  # 64 stacked (head, batch, seq) rows
QKV_W = 3 * DIM_HEAD               # 24 lanes per head in the permuted qkv projection
NEG_INF = -1e30

assert DIM == INNER, "weight-slab packing below assumes DIM == heads*dim_head"
assert N & (N - 1) == 0, "block-diagonal group mask uses a shift; N must be a power of two"
GROUP_SHIFT = N.bit_length() - 1   # log2(N): row r belongs to group r >> GROUP_SHIFT

# Column permutation applied to the qkv projection outside the kernel so that lanes
# [h*24 : (h+1)*24] of the projected activations hold [q_h | k_h | v_h].
_HEAD_PERM = np.concatenate(
    [np.concatenate([np.arange(h * DIM_HEAD, (h + 1) * DIM_HEAD) + s * INNER
                     for s in range(3)])
     for h in range(HEADS)])       # (96,)


def _prenorm_attn_kernel(x_ref, w_ref, b_ref, attn_ref, out_ref):
    x = x_ref[...]                                   # (B*N, DIM) = (16, 32)
    w = w_ref[...]                                   # (32, 128): [qkv (per-head permuted) | out]
    bias = b_ref[...]                                # (1, 128):  [b_qkv (permuted)        | b_out]

    w_qkv = w[:, :HEADS * QKV_W]                     # (32, 96)
    w_o = w[:, HEADS * QKV_W:]                       # (32, 32)
    b_qkv = bias[:, :HEADS * QKV_W]                  # (1, 96)
    b_o = bias[:, HEADS * QKV_W:]                    # (1, 32)

    # ---- LayerNorm (gamma/beta already folded into w_qkv / b_qkv outside the kernel) ----
    mu = jnp.mean(x, axis=-1, keepdims=True)
    xc = x - mu
    var = jnp.mean(xc * xc, axis=-1, keepdims=True)
    xh = xc * lax.rsqrt(var + LN_EPS)                # (16, 32)

    # ---- fused qkv projection: one MXU push ----
    qkv = jnp.dot(xh, w_qkv, preferred_element_type=jnp.float32) + b_qkv    # (16, 96)

    # ---- stack heads along rows: (16, 96) -> (64, 24), rows ordered (head, batch, seq).
    # One static 24-lane slice per head + a single sublane concat (weight columns were
    # permuted per head outside the kernel).
    qkv_g = jnp.concatenate(
        [qkv[:, h * QKV_W:(h + 1) * QKV_W] for h in range(HEADS)], axis=0)  # (64, 24)
    q = qkv_g[:, :DIM_HEAD]                          # (64, 8)
    k = qkv_g[:, DIM_HEAD:2 * DIM_HEAD]              # (64, 8)
    v = qkv_g[:, 2 * DIM_HEAD:]                      # (64, 8)

    # ---- all heads' QK^T in ONE MXU push (contract last dims; no materialized k.T) ----
    dots = lax.dot_general(q, k, (((1,), (1,)), ((), ())),
                           preferred_element_type=jnp.float32) * SCALE      # (64, 64)

    # ---- mask cross-(head,batch) blocks: each group owns N consecutive rows/cols ----
    rid = lax.broadcasted_iota(jnp.int32, (G, G), 0)
    cid = lax.broadcasted_iota(jnp.int32, (G, G), 1)
    same_group = (rid >> GROUP_SHIFT) == (cid >> GROUP_SHIFT)
    dots = jnp.where(same_group, dots, NEG_INF)

    # ---- softmax over full rows (masked entries underflow to exactly 0); exact divide ----
    m = jnp.max(dots, axis=-1, keepdims=True)
    e = jnp.exp(dots - m)
    attn = e / jnp.sum(e, axis=-1, keepdims=True)                            # (64, 64)

    # ---- attn @ V: ONE MXU push ----
    o = jnp.dot(attn, v, preferred_element_type=jnp.float32)                 # (64, 8)

    # ---- merge heads back to (B*N, INNER) with lanes ordered (head, dim_head) ----
    o2 = jnp.concatenate(
        [o[h * ROWS:(h + 1) * ROWS, :] for h in range(HEADS)], axis=-1)      # (16, 32)

    # ---- output projection (Dropout(p=0.0) == identity) ----
    out = jnp.dot(o2, w_o, preferred_element_type=jnp.float32) + b_o         # (16, 32)

    attn_ref[...] = attn        # (64, 64) block-diagonal attention matrix (natural layout)
    out_ref[...] = out          # (16, 32) natural layout


@jax.jit
def prenorm_attention(x, gamma, beta, w_qkv, w_out, b_out):
    """PreNorm(dim, Attention(...)) forward.  Returns (attn (B,H,N,N), out (B,N,DIM))."""
    # Fold LayerNorm's affine params into the qkv projection and permute its columns
    # per head (all outside the kernel, fused by XLA).
    w_qkv_ln = gamma[:, None] * w_qkv                      # (32, 96)
    b_qkv_ln = beta @ w_qkv                                # (96,)
    w_qkv_p = w_qkv_ln[:, _HEAD_PERM]
    b_qkv_p = b_qkv_ln[_HEAD_PERM]

    # Pack all parameters into one lane-dense (32, 128) slab + one (1, 128) bias row
    # -> 3 input DMAs total instead of 6.
    w_slab = jnp.concatenate([w_qkv_p, w_out], axis=1)     # (32, 128)
    b_slab = jnp.concatenate([b_qkv_p, b_out])[None, :]    # (1, 128)
    x2 = x.reshape(ROWS, DIM)                              # (16, 32)  (major-dim fold, free)

    attn_blocks, out2d = pl.pallas_call(
        _prenorm_attn_kernel,
        out_shape=(jax.ShapeDtypeStruct((G, G), jnp.float32),
                   jax.ShapeDtypeStruct((ROWS, DIM), jnp.float32)),
        in_specs=[pl.BlockSpec(memory_space=pltpu.MemorySpace.VMEM)] * 3,
        out_specs=(pl.BlockSpec(memory_space=pltpu.MemorySpace.VMEM),
                   pl.BlockSpec(memory_space=pltpu.MemorySpace.VMEM)),
        cost_estimate=pl.CostEstimate(flops=262_144, transcendentals=4_112,
                                      bytes_accessed=37_376),
    )(x2, w_slab, b_slab)

    # Extract the per-(batch, head) diagonal (N, N) blocks of the block matrix and
    # reshape to the module's output layouts -- cheap XLA ops outside the kernel.
    a4 = attn_blocks.reshape(HEADS * B, N, HEADS * B, N)
    diag = jnp.diagonal(a4, axis1=0, axis2=2)              # (N, N, H*B)
    attn = jnp.moveaxis(diag, -1, 0).reshape(HEADS, B, N, N).transpose(1, 0, 2, 3)
    out = out2d.reshape(B, N, DIM)
    return attn, out


# ---------------- pure-JAX reference for sanity ----------------
def reference(x, gamma, beta, w_qkv, w_out, b_out):
    mu = jnp.mean(x, axis=-1, keepdims=True)
    var = jnp.mean((x - mu) ** 2, axis=-1, keepdims=True)
    xn = (x - mu) / jnp.sqrt(var + LN_EPS) * gamma + beta
    qkv = xn @ w_qkv
    q, k, v = jnp.split(qkv, 3, axis=-1)

    def split_heads(t):                                    # (B, N, H*d) -> (B, H, N, d)
        bb, nn, _ = t.shape
        return t.reshape(bb, nn, HEADS, DIM_HEAD).transpose(0, 2, 1, 3)

    q, k, v = map(split_heads, (q, k, v))
    dots = jnp.einsum('bhid,bhjd->bhij', q, k) * SCALE
    attn = jax.nn.softmax(dots, axis=-1)
    o = jnp.einsum('bhij,bhjd->bhid', attn, v)
    o = o.transpose(0, 2, 1, 3).reshape(x.shape[0], x.shape[1], INNER)
    return attn, o @ w_out + b_out


if __name__ == "__main__":
    key = jax.random.PRNGKey(0)
    kx, kq, ko, kg, kb, kbo = jax.random.split(key, 6)

    x = jax.random.normal(kx, (B, N, DIM), dtype=jnp.float32)

    # Deterministic synthetic parameters (shapes from the module's __init__).
    gamma = jnp.ones((DIM,), jnp.float32) + 0.01 * jax.random.normal(kg, (DIM,), dtype=jnp.float32)
    beta = 0.01 * jax.random.normal(kb, (DIM,), dtype=jnp.float32)
    # nn.Linear(dim, 3*inner, bias=False) -> stored transposed: (dim, 3*inner)
    w_qkv = 0.1 * jax.random.normal(kq, (DIM, 3 * INNER), dtype=jnp.float32)
    # nn.Linear(inner, dim) -> stored transposed: (inner, dim), plus bias (dim,)
    w_out = 0.1 * jax.random.normal(ko, (INNER, DIM), dtype=jnp.float32)
    b_out = 0.01 * jax.random.normal(kbo, (DIM,), dtype=jnp.float32)

    attn, out = jax.block_until_ready(
        prenorm_attention(x, gamma, beta, w_qkv, w_out, b_out))

    attn_ref, out_ref = reference(x, gamma, beta, w_qkv, w_out, b_out)
    # Tolerance covers the MXU's bf16-pass f32 matmuls (different summation order in the
    # kernel vs the XLA reference); a layout/indexing bug would be orders of magnitude
    # larger.  The softmax itself now uses an exact divide.
    np.testing.assert_allclose(np.asarray(attn), np.asarray(attn_ref), rtol=2e-2, atol=5e-3)
    np.testing.assert_allclose(np.asarray(out), np.asarray(out_ref), rtol=2e-2, atol=5e-3)

    print("KERNEL_OK")
</pallas_src>

<mosaic_0001>
module attributes {stable_mosaic.version = 11 : i64} {
  func.func @_prenorm_attn_kernel(%arg0: memref<16x32xf32, #tpu.memory_space<vmem>>, %arg1: memref<32x128xf32, #tpu.memory_space<vmem>>, %arg2: memref<1x128xf32, #tpu.memory_space<vmem>>, %arg3: memref<64x64xf32, #tpu.memory_space<vmem>>, %arg4: memref<16x32xf32, #tpu.memory_space<vmem>>) attributes {dimension_semantics = [], scalar_prefetch = 0 : i64, scratch_operands = 0 : i64, tpu.core_type = #tpu.core_type<tc>} {
    %c0 = arith.constant 0 : index
    %c0_0 = arith.constant 0 : index
    %0 = vector.load %arg0[%c0, %c0_0] : memref<16x32xf32, #tpu.memory_space<vmem>>, vector<16x32xf32>
    %c0_1 = arith.constant 0 : index
    %c0_2 = arith.constant 0 : index
    %1 = vector.load %arg1[%c0_1, %c0_2] : memref<32x128xf32, #tpu.memory_space<vmem>>, vector<32x128xf32>
    %c0_3 = arith.constant 0 : index
    %c0_4 = arith.constant 0 : index
    %2 = vector.load %arg2[%c0_3, %c0_4] : memref<1x128xf32, #tpu.memory_space<vmem>>, vector<1x128xf32>
    %3 = vector.extract_strided_slice %1 {offsets = [0, 0], sizes = [32, 96], strides = [1, 1]} : vector<32x128xf32> to vector<32x96xf32>
    %4 = vector.extract_strided_slice %1 {offsets = [0, 96], sizes = [32, 32], strides = [1, 1]} : vector<32x128xf32> to vector<32x32xf32>
    %5 = vector.extract_strided_slice %2 {offsets = [0, 0], sizes = [1, 96], strides = [1, 1]} : vector<1x128xf32> to vector<1x96xf32>
    %6 = vector.extract_strided_slice %2 {offsets = [0, 96], sizes = [1, 32], strides = [1, 1]} : vector<1x128xf32> to vector<1x32xf32>
    %cst = arith.constant dense<0.000000e+00> : vector<16xf32>
    %7 = vector.multi_reduction <add>, %0, %cst [1] : vector<16x32xf32> to vector<16xf32>
    %8 = vector.shape_cast %7 : vector<16xf32> to vector<16x1xf32>
    %cst_5 = arith.constant 3.200000e+01 : f32
    %9 = vector.broadcast %cst_5 : f32 to vector<16x1xf32>
    %10 = arith.divf %8, %9 : vector<16x1xf32>
    %11 = vector.broadcast %10 : vector<16x1xf32> to vector<16x32xf32>
    %12 = arith.subf %0, %11 : vector<16x32xf32>
    %13 = arith.mulf %12, %12 : vector<16x32xf32>
    %cst_6 = arith.constant dense<0.000000e+00> : vector<16xf32>
    %14 = vector.multi_reduction <add>, %13, %cst_6 [1] : vector<16x32xf32> to vector<16xf32>
    %15 = vector.shape_cast %14 : vector<16xf32> to vector<16x1xf32>
    %cst_7 = arith.constant 3.200000e+01 : f32
    %16 = vector.broadcast %cst_7 : f32 to vector<16x1xf32>
    %17 = arith.divf %15, %16 : vector<16x1xf32>
    %cst_8 = arith.constant 9.99999974E-6 : f32
    %18 = vector.broadcast %cst_8 : f32 to vector<16x1xf32>
    %19 = arith.addf %17, %18 : vector<16x1xf32>
    %20 = math.rsqrt %19 : vector<16x1xf32>
    %21 = vector.broadcast %20 : vector<16x1xf32> to vector<16x32xf32>
    %22 = arith.mulf %12, %21 : vector<16x32xf32>
    %cst_9 = arith.constant dense<0.000000e+00> : vector<16x96xf32>
    %23 = tpu.matmul %22, %3, %cst_9 {dimension_numbers = #tpu.dot_dimension_numbers<[1], [0], [0], [1], [0, 0, 1, 1], [], []>} : vector<16x32xf32>, vector<32x96xf32>, vector<16x96xf32> -> vector<16x96xf32>
    %24 = vector.broadcast %5 : vector<1x96xf32> to vector<16x96xf32>
    %25 = arith.addf %23, %24 : vector<16x96xf32>
    %26 = vector.extract_strided_slice %25 {offsets = [0, 0], sizes = [16, 24], strides = [1, 1]} : vector<16x96xf32> to vector<16x24xf32>
    %27 = vector.extract_strided_slice %25 {offsets = [0, 24], sizes = [16, 24], strides = [1, 1]} : vector<16x96xf32> to vector<16x24xf32>
    %28 = vector.extract_strided_slice %25 {offsets = [0, 48], sizes = [16, 24], strides = [1, 1]} : vector<16x96xf32> to vector<16x24xf32>
    %29 = vector.extract_strided_slice %25 {offsets = [0, 72], sizes = [16, 24], strides = [1, 1]} : vector<16x96xf32> to vector<16x24xf32>
    %30 = tpu.concatenate %26, %27, %28, %29 in 0 : vector<16x24xf32>, vector<16x24xf32>, vector<16x24xf32>, vector<16x24xf32> -> vector<64x24xf32>
    %31 = vector.extract_strided_slice %30 {offsets = [0, 0], sizes = [64, 8], strides = [1, 1]} : vector<64x24xf32> to vector<64x8xf32>
    %32 = vector.extract_strided_slice %30 {offsets = [0, 8], sizes = [64, 8], strides = [1, 1]} : vector<64x24xf32> to vector<64x8xf32>
    %33 = vector.extract_strided_slice %30 {offsets = [0, 16], sizes = [64, 8], strides = [1, 1]} : vector<64x24xf32> to vector<64x8xf32>
    %cst_10 = arith.constant dense<0.000000e+00> : vector<64x64xf32>
    %34 = tpu.matmul %31, %32, %cst_10 {dimension_numbers = #tpu.dot_dimension_numbers<[1], [1], [0], [0], [0, 0, 1, 0], [], []>} : vector<64x8xf32>, vector<64x8xf32>, vector<64x64xf32> -> vector<64x64xf32>
    %cst_11 = arith.constant 0.176776692 : f32
    %35 = vector.broadcast %cst_11 : f32 to vector<64x64xf32>
    %36 = arith.mulf %34, %35 : vector<64x64xf32>
    %37 = tpu.iota {dimensions = array<i32: 0>} : vector<64x64xi32>
    %38 = tpu.iota {dimensions = array<i32: 1>} : vector<64x64xi32>
    %c3_i32 = arith.constant 3 : i32
    %39 = vector.broadcast %c3_i32 : i32 to vector<64x64xi32>
    %40 = arith.shrsi %37, %39 : vector<64x64xi32>
    %c3_i32_12 = arith.constant 3 : i32
    %41 = vector.broadcast %c3_i32_12 : i32 to vector<64x64xi32>
    %42 = arith.shrsi %38, %41 : vector<64x64xi32>
    %43 = arith.cmpi eq, %40, %42 : vector<64x64xi32>
    %cst_13 = arith.constant -1.000000e+30 : f32
    %44 = vector.broadcast %cst_13 : f32 to vector<64x64xf32>
    %45 = arith.select %43, %36, %44 : vector<64x64xi1>, vector<64x64xf32>
    %cst_14 = arith.constant dense<0xFF800000> : vector<64xf32>
    %46 = vector.multi_reduction <maximumf>, %45, %cst_14 [1] : vector<64x64xf32> to vector<64xf32>
    %47 = vector.shape_cast %46 : vector<64xf32> to vector<64x1xf32>
    %48 = vector.broadcast %47 : vector<64x1xf32> to vector<64x64xf32>
    %49 = arith.subf %45, %48 : vector<64x64xf32>
    %50 = math.exp %49 : vector<64x64xf32>
    %cst_15 = arith.constant dense<0.000000e+00> : vector<64xf32>
    %51 = vector.multi_reduction <add>, %50, %cst_15 [1] : vector<64x64xf32> to vector<64xf32>
    %52 = vector.shape_cast %51 : vector<64xf32> to vector<64x1xf32>
    %53 = vector.broadcast %52 : vector<64x1xf32> to vector<64x64xf32>
    %54 = arith.divf %50, %53 : vector<64x64xf32>
    %cst_16 = arith.constant dense<0.000000e+00> : vector<64x8xf32>
    %55 = tpu.matmul %54, %33, %cst_16 {dimension_numbers = #tpu.dot_dimension_numbers<[1], [0], [0], [1], [0, 0, 1, 1], [], []>} : vector<64x64xf32>, vector<64x8xf32>, vector<64x8xf32> -> vector<64x8xf32>
    %56 = vector.extract_strided_slice %55 {offsets = [0, 0], sizes = [16, 8], strides = [1, 1]} : vector<64x8xf32> to vector<16x8xf32>
    %57 = vector.extract_strided_slice %55 {offsets = [16, 0], sizes = [16, 8], strides = [1, 1]} : vector<64x8xf32> to vector<16x8xf32>
    %58 = vector.extract_strided_slice %55 {offsets = [32, 0], sizes = [16, 8], strides = [1, 1]} : vector<64x8xf32> to vector<16x8xf32>
    %59 = vector.extract_strided_slice %55 {offsets = [48, 0], sizes = [16, 8], strides = [1, 1]} : vector<64x8xf32> to vector<16x8xf32>
    %60 = tpu.concatenate %56, %57, %58, %59 in 1 : vector<16x8xf32>, vector<16x8xf32>, vector<16x8xf32>, vector<16x8xf32> -> vector<16x32xf32>
    %cst_17 = arith.constant dense<0.000000e+00> : vector<16x32xf32>
    %61 = tpu.matmul %60, %4, %cst_17 {dimension_numbers = #tpu.dot_dimension_numbers<[1], [0], [0], [1], [0, 0, 1, 1], [], []>} : vector<16x32xf32>, vector<32x32xf32>, vector<16x32xf32> -> vector<16x32xf32>
    %62 = vector.broadcast %6 : vector<1x32xf32> to vector<16x32xf32>
    %63 = arith.addf %61, %62 : vector<16x32xf32>
    %c0_18 = arith.constant 0 : index
    %c0_19 = arith.constant 0 : index
    %64 = vector.load %arg3[%c0_18, %c0_19] : memref<64x64xf32, #tpu.memory_space<vmem>>, vector<64x64xf32>
    tpu.vector_store %arg3[%c0_18, %c0_19], %54 {strides = array<i32>} : memref<64x64xf32, #tpu.memory_space<vmem>>, vector<64x64xf32>,
    %c0_20 = arith.constant 0 : index
    %c0_21 = arith.constant 0 : index
    %65 = vector.load %arg4[%c0_20, %c0_21] : memref<16x32xf32, #tpu.memory_space<vmem>>, vector<16x32xf32>
    tpu.vector_store %arg4[%c0_20, %c0_21], %63 {strides = array<i32>} : memref<16x32xf32, #tpu.memory_space<vmem>>, vector<16x32xf32>,
    return
  }
}

</mosaic_0001>

<llo_original>
// kernel: prenorm_attention.1
$region0: #{prenorm_attention.1}
  #allocation0 [shape = 'u32[]', space=smem, size = 0x4, offset = 0x4, fixed_abs, tag = 'smem constant byte address 0x4 - core index']
  #allocation1 [shape = 'u32[144,128]{1,0:T(1,128)}', space=vmem, size = 0x12000, scoped, tag = 'internal scratch']
  %s0 = inlined_call_operand.vmem [shape: f32[16,32], index: 0, kind: input, shape index: {}]
  %s1 = inlined_call_operand.vmem [shape: f32[32,128], index: 1, kind: input, shape index: {}]
  %s2 = inlined_call_operand.vmem [shape: f32[1,128], index: 2, kind: input, shape index: {}]
  %s3 = inlined_call_operand.vmem [shape: f32[64,64], index: 3, kind: output, shape index: {0}]
  %s4 = inlined_call_operand.hbm [shape: f32[16,32], index: 4, kind: output, shape index: {1}]
  %5 = xla_tuple %s3, %s4
  %s6 = sld [smem:[#allocation0]]
  $region30: #{prenorm_attention.1} parent=0
    _
  %s8 = ssub.s32 1, %s6
  %s9 = scalar_select 0, %s8, %s6
  $region1: #{prenorm_attention.1} parent=0
    #allocation2 [shape = 'u8[8192]{0}', space=vmem, size = 0x2000, scoped, tag = 'output window, operand 1, single buffered']
    #allocation3 [shape = 's32[1]{0}', space=sflag, size = 0x4, scoped, tag = 'scoped memory for prenorm_attention.1']
    %10 = vsyncpa [#allocation3], 0
    // Predicated region
    $region2: #{prenorm_attention.1} parent=1 // pred_check
      _
    $region3: #{prenorm_attention.1} parent=1 // pred_check_branch
      %12 = sbr.rel (0) target = $region5
    $region4: #{prenorm_attention.1} parent=1 // pred_region
      _
    $region5: #{prenorm_attention.1} parent=1 // pred_fallthru
      _
    // Predicated region
    $region6: #{prenorm_attention.1} parent=1 // pred_check
      _
    $region7: #{prenorm_attention.1} parent=1 // pred_check_branch
      %14 = sbr.rel (0) target = $region9
    $region8: #{prenorm_attention.1} parent=1 // pred_region
      _
    $region9: #{prenorm_attention.1} parent=1 // pred_fallthru
      _
    // Predicated region
    $region10: #{prenorm_attention.1} parent=1 // pred_check
      _
    $region11: #{prenorm_attention.1} parent=1 // pred_check_branch
      %16 = sbr.rel (0) target = $region13
    $region12: #{prenorm_attention.1} parent=1 // pred_region
      _
    $region13: #{prenorm_attention.1} parent=1 // pred_fallthru
      _
    %v17 = vld [vmem:[%s0] sm:$0xff]
    %v18 = vld [vmem:[%s0 + $0x8] sm:$0xff]
    %v19 = vld [vmem:[%s1] sm:$0xff]
    %v20 = vld [vmem:[%s1 + $0x8] sm:$0xff]
    %v21 = vld [vmem:[%s1 + $0x10] sm:$0xff]
    %v22 = vld [vmem:[%s1 + $0x18] sm:$0xff]
    %v23 = vld [vmem:[%s2] sm:$0x1]
    %vm24 = vcmask 261120
    %v25 = vsel %vm24, %v17, 0.0
    %26 = vadd.xlane.f32.xlu0 %v25
    %v27 = vpop.xlane.xlu0 %26
    %v28 = vsel %vm24, %v18, 0.0
    %29 = vadd.xlane.f32.xlu0 %v28
    %v30 = vpop.xlane.xlu0 %29
    %v31 = vrcp.pop 32.0
    %v32 = vmul.f32 %v27, %v31
    %v33 = vmul.f32 %v30, %v31
    %v34 = vsub.f32 %v17, %v32
    %v35 = vsub.f32 %v18, %v33
    %v36 = vmul.f32 %v34, %v34
    %v37 = vmul.f32 %v35, %v35
    %v38 = vsel %vm24, %v36, 0.0
    %39 = vadd.xlane.f32.xlu0 %v38
    %v40 = vpop.xlane.xlu0 %39
    %v41 = vsel %vm24, %v37, 0.0
    %42 = vadd.xlane.f32.xlu0 %v41
    %v43 = vpop.xlane.xlu0 %42
    %v44 = vmul.f32 %v40, %v31
    %v45 = vmul.f32 %v43, %v31
    %v46 = vadd.f32 %v44, 1e-05
    %v47 = vadd.f32 %v45, 1e-05
    %v48 = vrsqrt.pop %v46
    %v49 = vrsqrt.pop %v47
    %v50 = vmul.f32 %v34, %v48
    %v51 = vmul.f32 %v35, %v49
    %v53 = vlaneseq
    %v54 = vshrl.u32 %v53, 7
    %v55 = vsub.s32 0, %v54
    %v56 = vrot.slane %v23, %v55
    %v59 = vsel %vm24, %v50, 0
    %v62 = vsel %vm24, %v51, 0
    %64 = vmatprep.subr.mxu0 0.0
    %65 = vmatpush1.msra.mxu0 0.0
    %66 = vmatprep.subr.mxu0 0.0
    %67 = vmatpush1.msra.mxu0 0.0
    %68 = vmatprep.subr.mxu0 0.0
    %69 = vmatpush1.msra.mxu0 0.0
    %70 = vmatprep.subr.mxu0 0.0
    %71 = vmatpush1.msra.mxu0 0.0
    %72 = vmatprep.subr.mxu0 0.0
    %73 = vmatpush1.msra.mxu0 0.0
    %74 = vmatprep.subr.mxu0 0.0
    %75 = vmatpush1.msra.mxu0 0.0
    %76 = vmatprep.subr.mxu0 0.0
    %77 = vmatpush1.msra.mxu0 0.0
    %78 = vmatprep.subr.mxu0 0.0
    %79 = vmatpush1.msra.mxu0 0.0
    %80 = vmatprep.subr.mxu0 0.0
    %81 = vmatpush1.msra.mxu0 0.0
    %82 = vmatprep.subr.mxu0 0.0
    %83 = vmatpush1.msra.mxu0 0.0
    %84 = vmatprep.subr.mxu0 0.0
    %85 = vmatpush1.msra.mxu0 0.0
    %86 = vmatprep.subr.mxu0 0.0
    %87 = vmatpush1.msra.mxu0 0.0
    %88 = vmatprep.subr.mxu0 0.0
    %89 = vmatpush1.msra.mxu0 %v22
    %90 = vmatprep.subr.mxu0 0.0
    %91 = vmatpush1.msra.mxu0 %v21
    %92 = vmatprep.subr.mxu0 0.0
    %93 = vmatpush1.msra.mxu0 %v20
    %94 = vmatprep.subr.mxu0 0.0
    %95 = vmatpush1.msra.mxu0 %v19
    %96 = vmatprep.subr.mxu0 0.0
    %97 = vmatpush2.msra.mxu0 0.0
    %98 = vmatprep.subr.mxu0 0.0
    %99 = vmatpush2.msra.mxu0 0.0
    %100 = vmatprep.subr.mxu0 0.0
    %101 = vmatpush2.msra.mxu0 0.0
    %102 = vmatprep.subr.mxu0 0.0
    %103 = vmatpush2.msra.mxu0 0.0
    %104 = vmatprep.subr.mxu0 0.0
    %105 = vmatpush2.msra.mxu0 0.0
    %106 = vmatprep.subr.mxu0 0.0
    %107 = vmatpush2.msra.mxu0 0.0
    %108 = vmatprep.subr.mxu0 0.0
    %109 = vmatpush2.msra.mxu0 0.0
    %110 = vmatprep.subr.mxu0 0.0
    %111 = vmatpush2.msra.mxu0 0.0
    %112 = vmatprep.subr.mxu0 0.0
    %113 = vmatpush2.msra.mxu0 0.0
    %114 = vmatprep.subr.mxu0 0.0
    %115 = vmatpush2.msra.mxu0 0.0
    %116 = vmatprep.subr.mxu0 0.0
    %117 = vmatpush2.msra.mxu0 0.0
    %118 = vmatprep.subr.mxu0 0.0
    %119 = vmatpush2.msra.mxu0 0.0
    %120 = vmatprep.subr.mxu0 0.0
    %121 = vmatpush2.msra.mxu0 0.0
    %122 = vmatprep.subr.mxu0 0.0
    %123 = vmatpush2.msra.mxu0 0.0
    %124 = vmatprep.subr.mxu0 0.0
    %125 = vmatpush2.msra.mxu0 0.0
    %126 = vmatprep.subr.mxu0 0.0
    %127 = vmatpush2.msra.mxu0 0.0
    %128 = vmatprep.mubr.f32.mxu0 0.0
    %129 = vmatmul.mubr.f32.gmra.mxu0 %v59
    %v130 = vpop.f32.mrf.mxu0
    %v131 = vadd.f32 %v56, %v130
    %v132 = vpop.f32.mrf.mxu0
    %133 = vmatprep.mubr.f32.mxu0 0.0
    %134 = vmatmul.mubr.f32.gmra.mxu0 %v62
    %v135 = vpop.f32.mrf.mxu0
    %v136 = vadd.f32 %v56, %v135
    %v137 = vpop.f32.mrf.mxu0
    %138 = vdwg.mxu0
    %141 = vrot.lane.b32.xlu0 %v131, 104
    %v142 = vpop.permute.xlu0 %141
    %143 = vrot.lane.b32.xlu0 %v136, 104
    %v144 = vpop.permute.xlu0 %143
    %145 = vrot.lane.b32.xlu0 %v131, 80
    %v146 = vpop.permute.xlu0 %145
    %147 = vrot.lane.b32.xlu0 %v136, 80
    %v148 = vpop.permute.xlu0 %147
    %149 = vrot.lane.b32.xlu0 %v131, 56
    %v150 = vpop.permute.xlu0 %149
    %151 = vrot.lane.b32.xlu0 %v136, 56
    %v152 = vpop.permute.xlu0 %151
    %153 = vrot.lane.b32.xlu0 %v131, 120
    %v154 = vpop.permute.xlu0 %153
    %155 = vrot.lane.b32.xlu0 %v136, 120
    %v156 = vpop.permute.xlu0 %155
    %157 = vrot.lane.b32.xlu0 %v142, 120
    %v158 = vpop.permute.xlu0 %157
    %159 = vrot.lane.b32.xlu0 %v144, 120
    %v160 = vpop.permute.xlu0 %159
    %161 = vrot.lane.b32.xlu0 %v146, 120
    %v162 = vpop.permute.xlu0 %161
    %163 = vrot.lane.b32.xlu0 %v148, 120
    %v164 = vpop.permute.xlu0 %163
    %165 = vrot.lane.b32.xlu0 %v150, 120
    %v166 = vpop.permute.xlu0 %165
    %167 = vrot.lane.b32.xlu0 %v152, 120
    %v168 = vpop.permute.xlu0 %167
    %vm169 = vcmask 64512
    %v170 = vsel %vm169, %v131, 0
    %v172 = vsel %vm169, %v136, 0
    %v174 = vsel %vm169, %v142, 0
    %v176 = vsel %vm169, %v144, 0
    %v178 = vsel %vm169, %v146, 0
    %v180 = vsel %vm169, %v148, 0
    %v182 = vsel %vm169, %v150, 0
    %v184 = vsel %vm169, %v152, 0
    %v186 = vsel %vm169, %v154, 0
    %v188 = vsel %vm169, %v156, 0
    %v190 = vsel %vm169, %v158, 0
    %v192 = vsel %vm169, %v160, 0
    %v194 = vsel %vm169, %v162, 0
    %v196 = vsel %vm169, %v164, 0
    %v198 = vsel %vm169, %v166, 0
    %v200 = vsel %vm169, %v168, 0
    %202 = vmatprep.subr.mxu0 0.0
    %203 = vmatpush1.xpose.msra.mxu0 0.0
    %204 = vmatprep.subr.mxu0 0.0
    %205 = vmatpush1.xpose.msra.mxu0 0.0
    %206 = vmatprep.subr.mxu0 0.0
    %207 = vmatpush1.xpose.msra.mxu0 0.0
    %208 = vmatprep.subr.mxu0 0.0
    %209 = vmatpush1.xpose.msra.mxu0 0.0
    %210 = vmatprep.subr.mxu0 0.0
    %211 = vmatpush1.xpose.msra.mxu0 0.0
    %212 = vmatprep.subr.mxu0 0.0
    %213 = vmatpush1.xpose.msra.mxu0 0.0
    %214 = vmatprep.subr.mxu0 0.0
    %215 = vmatpush1.xpose.msra.mxu0 0.0
    %216 = vmatprep.subr.mxu0 0.0
    %217 = vmatpush1.xpose.msra.mxu0 0.0
    %218 = vmatprep.subr.mxu0 0.0
    %219 = vmatpush1.xpose.msra.mxu0 %v200
    %220 = vmatprep.subr.mxu0 0.0
    %221 = vmatpush1.xpose.msra.mxu0 %v198
    %222 = vmatprep.subr.mxu0 0.0
    %223 = vmatpush1.xpose.msra.mxu0 %v196
    %224 = vmatprep.subr.mxu0 0.0
    %225 = vmatpush1.xpose.msra.mxu0 %v194
    %226 = vmatprep.subr.mxu0 0.0
    %227 = vmatpush1.xpose.msra.mxu0 %v192
    %228 = vmatprep.subr.mxu0 0.0
    %229 = vmatpush1.xpose.msra.mxu0 %v190
    %230 = vmatprep.subr.mxu0 0.0
    %231 = vmatpush1.xpose.msra.mxu0 %v188
    %232 = vmatprep.subr.mxu0 0.0
    %233 = vmatpush1.xpose.msra.mxu0 %v186
    %234 = vmatprep.subr.mxu0 0.0
    %235 = vmatpush2.xpose.msra.mxu0 0.0
    %236 = vmatprep.subr.mxu0 0.0
    %237 = vmatpush2.xpose.msra.mxu0 0.0
    %238 = vmatprep.subr.mxu0 0.0
    %239 = vmatpush2.xpose.msra.mxu0 0.0
    %240 = vmatprep.subr.mxu0 0.0
    %241 = vmatpush2.xpose.msra.mxu0 0.0
    %242 = vmatprep.subr.mxu0 0.0
    %243 = vmatpush2.xpose.msra.mxu0 0.0
    %244 = vmatprep.subr.mxu0 0.0
    %245 = vmatpush2.xpose.msra.mxu0 0.0
    %246 = vmatprep.subr.mxu0 0.0
    %247 = vmatpush2.xpose.msra.mxu0 0.0
    %248 = vmatprep.subr.mxu0 0.0
    %249 = vmatpush2.xpose.msra.mxu0 0.0
    %250 = vmatprep.subr.mxu0 0.0
    %251 = vmatpush2.xpose.msra.mxu0 0.0
    %252 = vmatprep.subr.mxu0 0.0
    %253 = vmatpush2.xpose.msra.mxu0 0.0
    %254 = vmatprep.subr.mxu0 0.0
    %255 = vmatpush2.xpose.msra.mxu0 0.0
    %256 = vmatprep.subr.mxu0 0.0
    %257 = vmatpush2.xpose.msra.mxu0 0.0
    %258 = vmatprep.subr.mxu0 0.0
    %259 = vmatpush2.xpose.msra.mxu0 0.0
    %260 = vmatprep.subr.mxu0 0.0
    %261 = vmatpush2.xpose.msra.mxu0 0.0
    %262 = vmatprep.subr.mxu0 0.0
    %263 = vmatpush2.xpose.msra.mxu0 0.0
    %264 = vmatprep.subr.mxu0 0.0
    %265 = vmatpush2.xpose.msra.mxu0 0.0
    %266 = vmatprep.mubr.f32.mxu0 0.0
    %267 = vmatmul.mubr.f32.gmra.mxu0 %v170
    %v268 = vpop.f32.mrf.mxu0
    %v269 = vadd.f32 0.0, %v268
    %v270 = vpop.f32.mrf.mxu0
    %271 = vmatprep.mubr.f32.mxu0 0.0
    %272 = vmatmul.mubr.f32.gmra.mxu0 %v172
    %v273 = vpop.f32.mrf.mxu0
    %v274 = vadd.f32 0.0, %v273
    %v275 = vpop.f32.mrf.mxu0
    %276 = vmatprep.mubr.f32.mxu0 0.0
    %277 = vmatmul.mubr.f32.gmra.mxu0 %v174
    %v278 = vpop.f32.mrf.mxu0
    %v279 = vadd.f32 0.0, %v278
    %v280 = vpop.f32.mrf.mxu0
    %281 = vmatprep.mubr.f32.mxu0 0.0
    %282 = vmatmul.mubr.f32.gmra.mxu0 %v176
    %v283 = vpop.f32.mrf.mxu0
    %v284 = vadd.f32 0.0, %v283
    %v285 = vpop.f32.mrf.mxu0
    %286 = vmatprep.mubr.f32.mxu0 0.0
    %287 = vmatmul.mubr.f32.gmra.mxu0 %v178
    %v288 = vpop.f32.mrf.mxu0
    %v289 = vadd.f32 0.0, %v288
    %v290 = vpop.f32.mrf.mxu0
    %291 = vmatprep.mubr.f32.mxu0 0.0
    %292 = vmatmul.mubr.f32.gmra.mxu0 %v180
    %v293 = vpop.f32.mrf.mxu0
    %v294 = vadd.f32 0.0, %v293
    %v295 = vpop.f32.mrf.mxu0
    %296 = vmatprep.mubr.f32.mxu0 0.0
    %297 = vmatmul.mubr.f32.gmra.mxu0 %v182
    %v298 = vpop.f32.mrf.mxu0
    %v299 = vadd.f32 0.0, %v298
    %v300 = vpop.f32.mrf.mxu0
    %301 = vmatprep.mubr.f32.mxu0 0.0
    %302 = vmatmul.mubr.f32.gmra.mxu0 %v184
    %v303 = vpop.f32.mrf.mxu0
    %v304 = vadd.f32 0.0, %v303
    %v305 = vpop.f32.mrf.mxu0
    %306 = vdwg.mxu0
    %v307 = vmul.f32 %v269, 0.17677669
    %v308 = vmul.f32 %v274, 0.17677669
    %v309 = vmul.f32 %v279, 0.17677669
    %v310 = vmul.f32 %v284, 0.17677669
    %v311 = vmul.f32 %v289, 0.17677669
    %v312 = vmul.f32 %v294, 0.17677669
    %v313 = vmul.f32 %v299, 0.17677669
    %v314 = vmul.f32 %v304, 0.17677669
    %v315 = vlaneseq
    %v316 = vshrl.u32 %v315, 7
    %v317 = vadd.s32 %v316, 8
    %v318 = vadd.s32 %v316, 16
    %v319 = vadd.s32 %v316, 24
    %v320 = vadd.s32 %v316, 32
    %v321 = vadd.s32 %v316, 40
    %v322 = vadd.s32 %v316, 48
    %v323 = vadd.s32 %v316, 56
    %v324 = vlaneseq
    %v325 = vand.u32 %v324, 127
    %v326 = vshra.s32 %v316, 3
    %v327 = vshra.s32 %v317, 3
    %v328 = vshra.s32 %v318, 3
    %v329 = vshra.s32 %v319, 3
    %v330 = vshra.s32 %v320, 3
    %v331 = vshra.s32 %v321, 3
    %v332 = vshra.s32 %v322, 3
    %v333 = vshra.s32 %v323, 3
    %v334 = vshra.s32 %v325, 3
    %vm335 = vcmp.eq.s32.totalorder %v326, %v334
    %vm336 = vcmp.eq.s32.totalorder %v327, %v334
    %vm337 = vcmp.eq.s32.totalorder %v328, %v334
    %vm338 = vcmp.eq.s32.totalorder %v329, %v334
    %vm339 = vcmp.eq.s32.totalorder %v330, %v334
    %vm340 = vcmp.eq.s32.totalorder %v331, %v334
    %vm341 = vcmp.eq.s32.totalorder %v332, %v334
    %vm342 = vcmp.eq.s32.totalorder %v333, %v334
    %v343 = vsel %vm335, %v307, -1e+30
    %v344 = vsel %vm336, %v308, -1e+30
    %v345 = vsel %vm337, %v309, -1e+30
    %v346 = vsel %vm338, %v310, -1e+30
    %v347 = vsel %vm339, %v311, -1e+30
    %v348 = vsel %vm340, %v312, -1e+30
    %v349 = vsel %vm341, %v313, -1e+30
    %v350 = vsel %vm342, %v314, -1e+30
    %vm351 = vcmask 523264
    %v352 = vsel %vm351, %v343, -inf
    %353 = vmax.xlane.f32.xlu0 %v352
    %v354 = vpop.xlane.xlu0 %353
    %v355 = vsel %vm351, %v344, -inf
    %356 = vmax.xlane.f32.xlu0 %v355
    %v357 = vpop.xlane.xlu0 %356
    %v358 = vsel %vm351, %v345, -inf
    %359 = vmax.xlane.f32.xlu0 %v358
    %v360 = vpop.xlane.xlu0 %359
    %v361 = vsel %vm351, %v346, -inf
    %362 = vmax.xlane.f32.xlu0 %v361
    %v363 = vpop.xlane.xlu0 %362
    %v364 = vsel %vm351, %v347, -inf
    %365 = vmax.xlane.f32.xlu0 %v364
    %v366 = vpop.xlane.xlu0 %365
    %v367 = vsel %vm351, %v348, -inf
    %368 = vmax.xlane.f32.xlu0 %v367
    %v369 = vpop.xlane.xlu0 %368
    %v370 = vsel %vm351, %v349, -inf
    %371 = vmax.xlane.f32.xlu0 %v370
    %v372 = vpop.xlane.xlu0 %371
    %v373 = vsel %vm351, %v350, -inf
    %374 = vmax.xlane.f32.xlu0 %v373
    %v375 = vpop.xlane.xlu0 %374
    %v376 = vsub.f32 %v343, %v354
    %v377 = vsub.f32 %v344, %v357
    %v378 = vsub.f32 %v345, %v360
    %v379 = vsub.f32 %v346, %v363
    %v380 = vsub.f32 %v347, %v366
    %v381 = vsub.f32 %v348, %v369
    %v382 = vsub.f32 %v349, %v372
    %v383 = vsub.f32 %v350, %v375
    %v384 = vmul.f32 %v376, 1.442695
    %v385 = vpow.pop %v384
    %v386 = vmul.f32 %v377, 1.442695
    %v387 = vpow.pop %v386
    %v388 = vmul.f32 %v378, 1.442695
    %v389 = vpow.pop %v388
    %v390 = vmul.f32 %v379, 1.442695
    %v391 = vpow.pop %v390
    %v392 = vmul.f32 %v380, 1.442695
    %v393 = vpow.pop %v392
    %v394 = vmul.f32 %v381, 1.442695
    %v395 = vpow.pop %v394
    %v396 = vmul.f32 %v382, 1.442695
    %v397 = vpow.pop %v396
    %v398 = vmul.f32 %v383, 1.442695
    %v399 = vpow.pop %v398
    %v400 = vsel %vm351, %v385, 0.0
    %401 = vadd.xlane.f32.xlu0 %v400
    %v402 = vpop.xlane.xlu0 %401
    %v403 = vsel %vm351, %v387, 0.0
    %404 = vadd.xlane.f32.xlu0 %v403
    %v405 = vpop.xlane.xlu0 %404
    %v406 = vsel %vm351, %v389, 0.0
    %407 = vadd.xlane.f32.xlu0 %v406
    %v408 = vpop.xlane.xlu0 %407
    %v409 = vsel %vm351, %v391, 0.0
    %410 = vadd.xlane.f32.xlu0 %v409
    %v411 = vpop.xlane.xlu0 %410
    %v412 = vsel %vm351, %v393, 0.0
    %413 = vadd.xlane.f32.xlu0 %v412
    %v414 = vpop.xlane.xlu0 %413
    %v415 = vsel %vm351, %v395, 0.0
    %416 = vadd.xlane.f32.xlu0 %v415
    %v417 = vpop.xlane.xlu0 %416
    %v418 = vsel %vm351, %v397, 0.0
    %419 = vadd.xlane.f32.xlu0 %v418
    %v420 = vpop.xlane.xlu0 %419
    %v421 = vsel %vm351, %v399, 0.0
    %422 = vadd.xlane.f32.xlu0 %v421
    %v423 = vpop.xlane.xlu0 %422
    %v424 = vrcp.pop %v402
    %v425 = vmul.f32 %v385, %v424
    %v426 = vrcp.pop %v405
    %v427 = vmul.f32 %v387, %v426
    %v428 = vrcp.pop %v408
    %v429 = vmul.f32 %v389, %v428
    %v430 = vrcp.pop %v411
    %v431 = vmul.f32 %v391, %v430
    %v432 = vrcp.pop %v414
    %v433 = vmul.f32 %v393, %v432
    %v434 = vrcp.pop %v417
    %v435 = vmul.f32 %v395, %v434
    %v436 = vrcp.pop %v420
    %v437 = vmul.f32 %v397, %v436
    %v438 = vrcp.pop %v423
    %v439 = vmul.f32 %v399, %v438
    %440 = vrot.lane.b32.xlu0 %v131, 112
    %v441 = vpop.permute.xlu0 %440
    %442 = vrot.lane.b32.xlu0 %v136, 112
    %v443 = vpop.permute.xlu0 %442
    %444 = vrot.lane.b32.xlu0 %v142, 112
    %v445 = vpop.permute.xlu0 %444
    %446 = vrot.lane.b32.xlu0 %v144, 112
    %v447 = vpop.permute.xlu0 %446
    %448 = vrot.lane.b32.xlu0 %v146, 112
    %v449 = vpop.permute.xlu0 %448
    %450 = vrot.lane.b32.xlu0 %v148, 112
    %v451 = vpop.permute.xlu0 %450
    %452 = vrot.lane.b32.xlu0 %v150, 112
    %v453 = vpop.permute.xlu0 %452
    %454 = vrot.lane.b32.xlu0 %v152, 112
    %v455 = vpop.permute.xlu0 %454
    %v465 = vsel %vm351, %v425, 0
    %v468 = vsel %vm351, %v427, 0
    %v471 = vsel %vm351, %v429, 0
    %v474 = vsel %vm351, %v431, 0
    %v477 = vsel %vm351, %v433, 0
    %v480 = vsel %vm351, %v435, 0
    %v483 = vsel %vm351, %v437, 0
    %v486 = vsel %vm351, %v439, 0
    %488 = vmatprep.subr.mxu0 0.0
    %489 = vmatpush1.msra.mxu0 0.0
    %490 = vmatprep.subr.mxu0 0.0
    %491 = vmatpush1.msra.mxu0 0.0
    %492 = vmatprep.subr.mxu0 0.0
    %493 = vmatpush1.msra.mxu0 0.0
    %494 = vmatprep.subr.mxu0 0.0
    %495 = vmatpush1.msra.mxu0 0.0
    %496 = vmatprep.subr.mxu0 0.0
    %497 = vmatpush1.msra.mxu0 0.0
    %498 = vmatprep.subr.mxu0 0.0
    %499 = vmatpush1.msra.mxu0 0.0
    %500 = vmatprep.subr.mxu0 0.0
    %501 = vmatpush1.msra.mxu0 0.0
    %502 = vmatprep.subr.mxu0 0.0
    %503 = vmatpush1.msra.mxu0 0.0
    %504 = vmatprep.subr.mxu0 0.0
    %505 = vmatpush1.msra.mxu0 %v455
    %506 = vmatprep.subr.mxu0 0.0
    %507 = vmatpush1.msra.mxu0 %v453
    %508 = vmatprep.subr.mxu0 0.0
    %509 = vmatpush1.msra.mxu0 %v451
    %510 = vmatprep.subr.mxu0 0.0
    %511 = vmatpush1.msra.mxu0 %v449
    %512 = vmatprep.subr.mxu0 0.0
    %513 = vmatpush1.msra.mxu0 %v447
    %514 = vmatprep.subr.mxu0 0.0
    %515 = vmatpush1.msra.mxu0 %v445
    %516 = vmatprep.subr.mxu0 0.0
    %517 = vmatpush1.msra.mxu0 %v443
    %518 = vmatprep.subr.mxu0 0.0
    %519 = vmatpush1.msra.mxu0 %v441
    %520 = vmatprep.subr.mxu0 0.0
    %521 = vmatpush2.msra.mxu0 0.0
    %522 = vmatprep.subr.mxu0 0.0
    %523 = vmatpush2.msra.mxu0 0.0
    %524 = vmatprep.subr.mxu0 0.0
    %525 = vmatpush2.msra.mxu0 0.0
    %526 = vmatprep.subr.mxu0 0.0
    %527 = vmatpush2.msra.mxu0 0.0
    %528 = vmatprep.subr.mxu0 0.0
    %529 = vmatpush2.msra.mxu0 0.0
    %530 = vmatprep.subr.mxu0 0.0
    %531 = vmatpush2.msra.mxu0 0.0
    %532 = vmatprep.subr.mxu0 0.0
    %533 = vmatpush2.msra.mxu0 0.0
    %534 = vmatprep.subr.mxu0 0.0
    %535 = vmatpush2.msra.mxu0 0.0
    %536 = vmatprep.subr.mxu0 0.0
    %537 = vmatpush2.msra.mxu0 0.0
    %538 = vmatprep.subr.mxu0 0.0
    %539 = vmatpush2.msra.mxu0 0.0
    %540 = vmatprep.subr.mxu0 0.0
    %541 = vmatpush2.msra.mxu0 0.0
    %542 = vmatprep.subr.mxu0 0.0
    %543 = vmatpush2.msra.mxu0 0.0
    %544 = vmatprep.subr.mxu0 0.0
    %545 = vmatpush2.msra.mxu0 0.0
    %546 = vmatprep.subr.mxu0 0.0
    %547 = vmatpush2.msra.mxu0 0.0
    %548 = vmatprep.subr.mxu0 0.0
    %549 = vmatpush2.msra.mxu0 0.0
    %550 = vmatprep.subr.mxu0 0.0
    %551 = vmatpush2.msra.mxu0 0.0
    %552 = vmatprep.mubr.f32.mxu0 0.0
    %553 = vmatmul.mubr.f32.gmra.mxu0 %v465
    %v554 = vpop.f32.mrf.mxu0
    %v555 = vadd.f32 0.0, %v554
    %v556 = vpop.f32.mrf.mxu0
    %557 = vmatprep.mubr.f32.mxu0 0.0
    %558 = vmatmul.mubr.f32.gmra.mxu0 %v468
    %v559 = vpop.f32.mrf.mxu0
    %v560 = vadd.f32 0.0, %v559
    %v561 = vpop.f32.mrf.mxu0
    %562 = vmatprep.mubr.f32.mxu0 0.0
    %563 = vmatmul.mubr.f32.gmra.mxu0 %v471
    %v564 = vpop.f32.mrf.mxu0
    %v565 = vadd.f32 0.0, %v564
    %v566 = vpop.f32.mrf.mxu0
    %567 = vmatprep.mubr.f32.mxu0 0.0
    %568 = vmatmul.mubr.f32.gmra.mxu0 %v474
    %v569 = vpop.f32.mrf.mxu0
    %v570 = vadd.f32 0.0, %v569
    %v571 = vpop.f32.mrf.mxu0
    %572 = vmatprep.mubr.f32.mxu0 0.0
    %573 = vmatmul.mubr.f32.gmra.mxu0 %v477
    %v574 = vpop.f32.mrf.mxu0
    %v575 = vadd.f32 0.0, %v574
    %v576 = vpop.f32.mrf.mxu0
    %577 = vmatprep.mubr.f32.mxu0 0.0
    %578 = vmatmul.mubr.f32.gmra.mxu0 %v480
    %v579 = vpop.f32.mrf.mxu0
    %v580 = vadd.f32 0.0, %v579
    %v581 = vpop.f32.mrf.mxu0
    %582 = vmatprep.mubr.f32.mxu0 0.0
    %583 = vmatmul.mubr.f32.gmra.mxu0 %v483
    %v584 = vpop.f32.mrf.mxu0
    %v585 = vadd.f32 0.0, %v584
    %v586 = vpop.f32.mrf.mxu0
    %587 = vmatprep.mubr.f32.mxu0 0.0
    %588 = vmatmul.mubr.f32.gmra.mxu0 %v486
    %v589 = vpop.f32.mrf.mxu0
    %v590 = vadd.f32 0.0, %v589
    %v591 = vpop.f32.mrf.mxu0
    %592 = vdwg.mxu0
    %595 = vrot.lane.b32.xlu0 %v565, 8
    %v596 = vpop.permute.xlu0 %595
    %597 = vrot.lane.b32.xlu0 %v570, 8
    %v598 = vpop.permute.xlu0 %597
    %603 = vrot.lane.b32.xlu0 %v575, 16
    %v604 = vpop.permute.xlu0 %603
    %605 = vrot.lane.b32.xlu0 %v580, 16
    %v606 = vpop.permute.xlu0 %605
    %611 = vrot.lane.b32.xlu0 %v585, 24
    %v612 = vpop.permute.xlu0 %611
    %613 = vrot.lane.b32.xlu0 %v590, 24
    %v614 = vpop.permute.xlu0 %613
    %v617 = vsel %vm169, %v555, %v596
    %v618 = vsel %vm169, %v560, %v598
    %vm619 = vcmask 130048
    %v620 = vsel %vm619, %v617, %v604
    %v621 = vsel %vm619, %v618, %v606
    %vm622 = vcmask 195584
    %v623 = vsel %vm622, %v620, %v612
    %v624 = vsel %vm622, %v621, %v614
    %629 = vrot.lane.b32.xlu0 %v19, 32
    %v630 = vpop.permute.xlu0 %629
    %631 = vrot.lane.b32.xlu0 %v20, 32
    %v632 = vpop.permute.xlu0 %631
    %633 = vrot.lane.b32.xlu0 %v21, 32
    %v634 = vpop.permute.xlu0 %633
    %635 = vrot.lane.b32.xlu0 %v22, 32
    %v636 = vpop.permute.xlu0 %635
    %641 = vrot.lane.b32.xlu0 %v56, 32
    %v642 = vpop.permute.xlu0 %641
    %v645 = vsel %vm24, %v623, 0
    %v648 = vsel %vm24, %v624, 0
    %650 = vmatprep.subr.mxu0 0.0
    %651 = vmatpush1.msra.mxu0 0.0
    %652 = vmatprep.subr.mxu0 0.0
    %653 = vmatpush1.msra.mxu0 0.0
    %654 = vmatprep.subr.mxu0 0.0
    %655 = vmatpush1.msra.mxu0 0.0
    %656 = vmatprep.subr.mxu0 0.0
    %657 = vmatpush1.msra.mxu0 0.0
    %658 = vmatprep.subr.mxu0 0.0
    %659 = vmatpush1.msra.mxu0 0.0
    %660 = vmatprep.subr.mxu0 0.0
    %661 = vmatpush1.msra.mxu0 0.0
    %662 = vmatprep.subr.mxu0 0.0
    %663 = vmatpush1.msra.mxu0 0.0
    %664 = vmatprep.subr.mxu0 0.0
    %665 = vmatpush1.msra.mxu0 0.0
    %666 = vmatprep.subr.mxu0 0.0
    %667 = vmatpush1.msra.mxu0 0.0
    %668 = vmatprep.subr.mxu0 0.0
    %669 = vmatpush1.msra.mxu0 0.0
    %670 = vmatprep.subr.mxu0 0.0
    %671 = vmatpush1.msra.mxu0 0.0
    %672 = vmatprep.subr.mxu0 0.0
    %673 = vmatpush1.msra.mxu0 0.0
    %674 = vmatprep.subr.mxu0 0.0
    %675 = vmatpush1.msra.mxu0 %v636
    %676 = vmatprep.subr.mxu0 0.0
    %677 = vmatpush1.msra.mxu0 %v634
    %678 = vmatprep.subr.mxu0 0.0
    %679 = vmatpush1.msra.mxu0 %v632
    %680 = vmatprep.subr.mxu0 0.0
    %681 = vmatpush1.msra.mxu0 %v630
    %682 = vmatprep.subr.mxu0 0.0
    %683 = vmatpush2.msra.mxu0 0.0
    %684 = vmatprep.subr.mxu0 0.0
    %685 = vmatpush2.msra.mxu0 0.0
    %686 = vmatprep.subr.mxu0 0.0
    %687 = vmatpush2.msra.mxu0 0.0
    %688 = vmatprep.subr.mxu0 0.0
    %689 = vmatpush2.msra.mxu0 0.0
    %690 = vmatprep.subr.mxu0 0.0
    %691 = vmatpush2.msra.mxu0 0.0
    %692 = vmatprep.subr.mxu0 0.0
    %693 = vmatpush2.msra.mxu0 0.0
    %694 = vmatprep.subr.mxu0 0.0
    %695 = vmatpush2.msra.mxu0 0.0
    %696 = vmatprep.subr.mxu0 0.0
    %697 = vmatpush2.msra.mxu0 0.0
    %698 = vmatprep.subr.mxu0 0.0
    %699 = vmatpush2.msra.mxu0 0.0
    %700 = vmatprep.subr.mxu0 0.0
    %701 = vmatpush2.msra.mxu0 0.0
    %702 = vmatprep.subr.mxu0 0.0
    %703 = vmatpush2.msra.mxu0 0.0
    %704 = vmatprep.subr.mxu0 0.0
    %705 = vmatpush2.msra.mxu0 0.0
    %706 = vmatprep.subr.mxu0 0.0
    %707 = vmatpush2.msra.mxu0 0.0
    %708 = vmatprep.subr.mxu0 0.0
    %709 = vmatpush2.msra.mxu0 0.0
    %710 = vmatprep.subr.mxu0 0.0
    %711 = vmatpush2.msra.mxu0 0.0
    %712 = vmatprep.subr.mxu0 0.0
    %713 = vmatpush2.msra.mxu0 0.0
    %714 = vmatprep.mubr.f32.mxu0 0.0
    %715 = vmatmul.mubr.f32.gmra.mxu0 %v645
    %v716 = vpop.f32.mrf.mxu0
    %v717 = vadd.f32 %v642, %v716
    %v718 = vpop.f32.mrf.mxu0
    %719 = vmatprep.mubr.f32.mxu0 0.0
    %720 = vmatmul.mubr.f32.gmra.mxu0 %v648
    %v721 = vpop.f32.mrf.mxu0
    %v722 = vadd.f32 %v642, %v721
    %v723 = vpop.f32.mrf.mxu0
    %724 = vdwg.mxu0
    %725 = vst.msk [vmem:[%s3] sm:$0xff] %vm351, %v425
    %726 = vst.msk [vmem:[%s3 + $0x8] sm:$0xff] %vm351, %v427
    %727 = vst.msk [vmem:[%s3 + $0x10] sm:$0xff] %vm351, %v429
    %728 = vst.msk [vmem:[%s3 + $0x18] sm:$0xff] %vm351, %v431
    %729 = vst.msk [vmem:[%s3 + $0x20] sm:$0xff] %vm351, %v433
    %730 = vst.msk [vmem:[%s3 + $0x28] sm:$0xff] %vm351, %v435
    %731 = vst.msk [vmem:[%s3 + $0x30] sm:$0xff] %vm351, %v437
    %732 = vst.msk [vmem:[%s3 + $0x38] sm:$0xff] %vm351, %v439
    %733 = vst.msk [vmem:[#allocation2] sm:$0xff] %vm24, %v717
    %734 = vst.msk [vmem:[#allocation2 + $0x8] sm:$0xff] %vm24, %v722
    // Predicated region
    $region14: #{prenorm_attention.1} parent=1 // pred_check
      _
    $region15: #{prenorm_attention.1} parent=1 // pred_check_branch
      %736 = sbr.rel (0) target = $region17
    $region16: #{prenorm_attention.1} parent=1 // pred_region
      _
    $region17: #{prenorm_attention.1} parent=1 // pred_fallthru
      _
    // Predicated region
    $region18: #{prenorm_attention.1} parent=1 // pred_check
      _
    $region19: #{prenorm_attention.1} parent=1 // pred_check_branch
      %738 = sbr.rel (0) target = $region21
    $region20: #{prenorm_attention.1} parent=1 // pred_region
      %s740 = ssub.s32 256, 256
      %741 = vsyncadd [#allocation3], %s740
      %s742 = sshll.u32 [#allocation2], 4
      %s743 = int_to_ptr.vmem [resolvable:$true] %s742
      %748 = dma.vmem_to_hbm [thread:$0]  %s743, 256, %s4, [#allocation3], 128, 128, 8
    $region21: #{prenorm_attention.1} parent=1 // pred_fallthru
      _
    // Predicated region
    $region22: #{prenorm_attention.1} parent=1 // pred_check
      _
    $region23: #{prenorm_attention.1} parent=1 // pred_check_branch
      %750 = sbr.rel (0) target = $region25
    $region24: #{prenorm_attention.1} parent=1 // pred_region
      _
    $region25: #{prenorm_attention.1} parent=1 // pred_fallthru
      _
    // Predicated region
    $region26: #{prenorm_attention.1} parent=1 // pred_check
      _
    $region27: #{prenorm_attention.1} parent=1 // pred_check_branch
      %752 = sbr.rel (0) target = $region29
    $region28: #{prenorm_attention.1} parent=1 // pred_region
      %753 = dma.done [#allocation3], 256
    $region29: #{prenorm_attention.1} parent=1 // pred_fallthru
      _
    %754 = vsyncpa [#allocation3], 1

</llo_original>
